<compile_context>
chip_gen: v5e
topology: v5e:2x2
jax: 0.10.0
libtpu: 0.0.40
codegen_flags: <defaults>
</compile_context>

<pallas_src>
import math
import functools

import jax
import jax.numpy as jnp
from jax.experimental import pallas as pl
from jax.experimental.pallas import tpu as pltpu


# ---------------------------------------------------------------------------
# Kernel 1: masked full scores on the MXU -> sparsity measure M (lane-dense)
# ---------------------------------------------------------------------------
def _sparsity_measure_kernel(q_ref, k_ref, cnt_ref, m_ref, *, inv_sample_k):
    # q_ref  : (1, 1, TQ, D)   bf16 query tile
    # k_ref  : (1, 1, L_K, D)  bf16 keys (full)
    # cnt_ref: (L_K, TQ)       bf16 sample-count mask (shared across B, H)
    # m_ref  : (1, 1, 1, TQ)   f32  sparsity measure, L_Q on the lane axis
    q = q_ref[0, 0]
    k = k_ref[0, 0]
    cnt = cnt_ref[...]

    # S^T[j, i] = K[j] . Q[i]  -> (L_K, TQ) on the MXU, f32 accumulate.
    st = jax.lax.dot_general(
        k, q, (((1,), (1,)), ((), ())), preferred_element_type=jnp.float32)

    sampled = cnt > 0
    s_max = jnp.max(jnp.where(sampled, st, -jnp.inf), axis=0, keepdims=True)   # (1, TQ)
    # duplicate-weighted mean over the sampled keys, exactly like torch's mean(-1)
    s_mean = jnp.sum(st * cnt.astype(jnp.float32), axis=0, keepdims=True) * inv_sample_k
    m_ref[0, 0] = s_max - s_mean


# ---------------------------------------------------------------------------
# Kernel 2: exact attention for top-u queries, scatter into cumsum(V) context
# ---------------------------------------------------------------------------
def _sparse_attn_kernel(idx_ref, qr_ref, k_ref, v_ref, cinit_ref, out_ref, *, scale):
    # idx_ref  : (1, 1, 1, U)   int32 top-u query indices, padded with -1
    # qr_ref   : (1, 1, U, D)   bf16 gathered top-u queries (zero padded)
    # k_ref    : (1, 1, L_K, D) bf16
    # v_ref    : (1, 1, L_K, D) bf16
    # cinit_ref: (1, 1, L_Q, D) f32  initial context = cumsum(V)
    # out_ref  : (1, 1, L_Q, D) f32
    idx = idx_ref[0, 0]             # (1, U)
    qr = qr_ref[0, 0]               # (U, D)
    k = k_ref[0, 0]                 # (L_K, D)
    v = v_ref[0, 0]                 # (L_K, D)
    cinit = cinit_ref[0, 0]         # (L_Q, D)

    # exact attention for selected queries (MXU, bf16 in, f32 accumulate)
    scores = jax.lax.dot_general(
        qr, k, (((1,), (1,)), ((), ())), preferred_element_type=jnp.float32) * scale
    s_max = jnp.max(scores, axis=-1, keepdims=True)
    e = jnp.exp(scores - s_max)
    denom = jnp.sum(e, axis=-1, keepdims=True)
    attn = e * pl.reciprocal(denom, approx=True)                               # EUP
    ctx_v = jnp.dot(attn.astype(jnp.bfloat16), v,
                    preferred_element_type=jnp.float32)                        # (U, D)

    # scatter: context[idx[u], :] = ctx_v[u, :]; one-hot built in-kernel
    l_q, u = cinit.shape[0], idx.shape[-1]
    qpos = jax.lax.broadcasted_iota(jnp.int32, (l_q, u), 0)
    sel = (qpos == idx).astype(jnp.float32)       # (L_Q, U); padded idx=-1 never matches
    hit = jnp.sum(sel, axis=-1, keepdims=True) > 0.0
    scattered = jnp.dot(sel, ctx_v, preferred_element_type=jnp.float32)        # (L_Q, D)
    out_ref[0, 0] = jnp.where(hit, scattered, cinit)


# ---------------------------------------------------------------------------
# Wrapper (JAX glue: sampling, count-mask, top_k, padding, cumsum context)
# ---------------------------------------------------------------------------
def _round_up(x, m):
    return ((x + m - 1) // m) * m


def _pick_lq_tile(l_q):
    for cand in (512, 256, 128):
        if l_q % cand == 0:
            return cand
    return l_q


def prob_attention(queries, keys, values, *, factor=5, scale=None, sample_key=None):
    """queries/keys/values: (B, L, H, D).  Returns (context, None) — matches the
    PyTorch module with mask_flag=True, output_attention=False."""
    B, L_Q, H, D = queries.shape
    _, L_K, _, _ = keys.shape
    # mask_flag=True initial context is cumsum(V) -> self-attention shapes
    assert L_Q == L_K, "cumsum initial context assumes self-attention (L_Q == L_K)"

    Qf = jnp.transpose(queries, (0, 2, 1, 3)).astype(jnp.float32)   # (B,H,L_Q,D)
    Kf = jnp.transpose(keys, (0, 2, 1, 3)).astype(jnp.float32)
    Vf = jnp.transpose(values, (0, 2, 1, 3)).astype(jnp.float32)
    Qb, Kb, Vb = (x.astype(jnp.bfloat16) for x in (Qf, Kf, Vf))     # MXU operands

    sample_k = min(factor * int(math.ceil(math.log(L_K))), L_K)
    n_top = min(factor * int(math.ceil(math.log(L_Q))), L_Q)

    if sample_key is None:
        sample_key = jax.random.PRNGKey(0)
    # TODO(synk): torch.randint sampling replicated with jax.random (different RNG stream).
    index_sample = jax.random.randint(sample_key, (L_Q, sample_k), 0, L_K)

    # Sample-count mask, transposed so L_Q sits on the lane axis. Counts <= sample_k
    # are exactly representable in bf16 (halves the mask's HBM->VMEM traffic).
    cnt = jnp.zeros((L_Q, L_K), jnp.float32).at[
        jnp.arange(L_Q)[:, None], index_sample].add(1.0)
    cnt_t = cnt.T.astype(jnp.bfloat16)                              # (L_K, L_Q)

    # --- Kernel 1: sparsity measure M (lane-dense output, tiled over L_Q) ---
    TQ = _pick_lq_tile(L_Q)
    m_out = pl.pallas_call(
        functools.partial(_sparsity_measure_kernel, inv_sample_k=1.0 / sample_k),
        out_shape=jax.ShapeDtypeStruct((B, H, 1, L_Q), jnp.float32),
        grid=(B, H, L_Q // TQ),
        in_specs=[
            pl.BlockSpec((1, 1, TQ, D), lambda b, h, t: (b, h, t, 0)),
            pl.BlockSpec((1, 1, L_K, D), lambda b, h, t: (b, h, 0, 0)),
            pl.BlockSpec((L_K, TQ), lambda b, h, t: (0, t)),        # shared across B,H
        ],
        out_specs=pl.BlockSpec((1, 1, 1, TQ), lambda b, h, t: (b, h, 0, t)),
        compiler_params=pltpu.CompilerParams(
            dimension_semantics=("parallel", "parallel", "parallel")),
    )(Qb, Kb, cnt_t)
    M = m_out[:, :, 0, :]                                           # (B, H, L_Q)

    # top-u query selection (data-dependent; stays in JAX glue)
    _, index = jax.lax.top_k(M, n_top)                              # (B, H, n_top) int32
    Q_reduce = jnp.take_along_axis(Qb, index[..., None], axis=2)    # (B, H, n_top, D)

    # pad the top-u dim toward 128 rows for MXU fill; padded rows use idx = -1
    U_pad = min(_round_up(n_top, 128), _round_up(L_Q, 8))
    pad = U_pad - n_top
    Q_reduce = jnp.pad(Q_reduce, ((0, 0), (0, 0), (0, pad), (0, 0)))
    idx_pad = jnp.pad(index.astype(jnp.int32), ((0, 0), (0, 0), (0, pad)),
                      constant_values=-1)[:, :, None, :]            # (B, H, 1, U_pad)

    # initial context = cumsum(V) (mask_flag=True branch), precomputed in f32
    ctx_init = jnp.cumsum(Vf, axis=2)                               # (B, H, L_K, D)

    sc = scale if scale is not None else 1.0 / math.sqrt(D)

    # --- Kernel 2: exact attention for top-u queries + scatter into ctx_init ---
    context = pl.pallas_call(
        functools.partial(_sparse_attn_kernel, scale=sc),
        out_shape=jax.ShapeDtypeStruct((B, H, L_Q, D), jnp.float32),
        grid=(B, H),
        in_specs=[
            pl.BlockSpec((1, 1, 1, U_pad), lambda b, h: (b, h, 0, 0)),
            pl.BlockSpec((1, 1, U_pad, D), lambda b, h: (b, h, 0, 0)),
            pl.BlockSpec((1, 1, L_K, D), lambda b, h: (b, h, 0, 0)),
            pl.BlockSpec((1, 1, L_K, D), lambda b, h: (b, h, 0, 0)),
            pl.BlockSpec((1, 1, L_Q, D), lambda b, h: (b, h, 0, 0)),
        ],
        out_specs=pl.BlockSpec((1, 1, L_Q, D), lambda b, h: (b, h, 0, 0)),
        compiler_params=pltpu.CompilerParams(
            dimension_semantics=("parallel", "parallel")),
    )(idx_pad, Q_reduce, Kb, Vb, ctx_init)

    context = jnp.transpose(context, (0, 2, 1, 3))                  # (B, L_Q, H, D)
    return context, None   # output_attention=False


# ---------------------------------------------------------------------------
# Pure-JAX reference (same sample indices, same bf16/f32 matmul policy)
# ---------------------------------------------------------------------------
def _prob_attention_ref(queries, keys, values, index_sample, *, factor=5, scale=None):
    Qf = jnp.transpose(queries, (0, 2, 1, 3)).astype(jnp.float32)
    Kf = jnp.transpose(keys, (0, 2, 1, 3)).astype(jnp.float32)
    Vf = jnp.transpose(values, (0, 2, 1, 3)).astype(jnp.float32)
    Qb, Kb, Vb = (x.astype(jnp.bfloat16) for x in (Qf, Kf, Vf))
    B, H, L_Q, D = Qf.shape

    K_sample = jnp.take(Kb, index_sample, axis=2)                   # (B,H,L_Q,s,D)
    QKs = jnp.einsum('bhqd,bhqsd->bhqs', Qb, K_sample,
                     preferred_element_type=jnp.float32)
    M = QKs.max(-1) - QKs.mean(-1)
    n_top = min(factor * int(math.ceil(math.log(L_Q))), L_Q)
    _, idx = jax.lax.top_k(M, n_top)
    Qr = jnp.take_along_axis(Qb, idx[..., None], axis=2)
    sc = scale if scale is not None else 1.0 / math.sqrt(D)
    scores = jnp.einsum('bhud,bhkd->bhuk', Qr, Kb,
                        preferred_element_type=jnp.float32) * sc
    attn = jax.nn.softmax(scores, axis=-1)
    ctx_v = jnp.einsum('bhuk,bhkd->bhud', attn.astype(jnp.bfloat16), Vb,
                       preferred_element_type=jnp.float32)
    ctx = jnp.cumsum(Vf, axis=2)

    def scat(ctx_bh, idx_bh, cv_bh):
        return ctx_bh.at[idx_bh].set(cv_bh)
    ctx = jax.vmap(jax.vmap(scat))(ctx, idx, ctx_v)
    return jnp.transpose(ctx, (0, 2, 1, 3))


if __name__ == "__main__":
    B, L, H, D = 2, 16, 2, 32
    root = jax.random.PRNGKey(0)
    kq, kk, kv, ks = jax.random.split(root, 4)
    queries = jax.random.normal(kq, (B, L, H, D), dtype=jnp.float32)
    keys = jax.random.normal(kk, (B, L, H, D), dtype=jnp.float32)
    values = jax.random.normal(kv, (B, L, H, D), dtype=jnp.float32)

    context, attn = prob_attention(queries, keys, values, sample_key=ks)
    context = jax.block_until_ready(context)
    assert context.shape == (B, L, H, D)
    assert bool(jnp.all(jnp.isfinite(context)))

    # compare against pure-JAX reference using the same sampled key indices
    sample_k = min(5 * int(math.ceil(math.log(L))), L)
    index_sample = jax.random.randint(ks, (L, sample_k), 0, L)
    ref = jax.block_until_ready(
        _prob_attention_ref(queries, keys, values, index_sample))
    assert jnp.allclose(context, ref, rtol=2e-2, atol=2e-2), "mismatch vs reference"

    print("KERNEL_OK")
</pallas_src>

<mosaic_0001>
module attributes {stable_mosaic.version = 11 : i64} {
  func.func @_sparsity_measure_kernel(%arg0: i32, %arg1: i32, %arg2: i32, %arg3: memref<1x1x16x32xbf16, #tpu.memory_space<vmem>>, %arg4: memref<1x1x16x32xbf16, #tpu.memory_space<vmem>>, %arg5: memref<16x16xbf16, #tpu.memory_space<vmem>>, %arg6: memref<1x1x1x16xf32, #tpu.memory_space<vmem>>) attributes {dimension_semantics = [#tpu.dimension_semantics<parallel>, #tpu.dimension_semantics<parallel>, #tpu.dimension_semantics<parallel>], iteration_bounds = array<i64: 2, 2, 1>, scalar_prefetch = 0 : i64, scratch_operands = 0 : i64, tpu.core_type = #tpu.core_type<tc>, window_params = [{transform_indices = @transform_0, window_bounds = array<i64: 1, 1, 16, 32>}, {transform_indices = @transform_1, window_bounds = array<i64: 1, 1, 16, 32>}, {transform_indices = @transform_2, window_bounds = array<i64: 16, 16>}, {transform_indices = @transform_3, window_bounds = array<i64: 1, 1, 1, 16>}]} {
    %c0 = arith.constant 0 : index
    %c0_0 = arith.constant 0 : index
    %c0_1 = arith.constant 0 : index
    %c0_2 = arith.constant 0 : index
    %0 = vector.load %arg3[%c0, %c0_0, %c0_1, %c0_2] : memref<1x1x16x32xbf16, #tpu.memory_space<vmem>>, vector<1x1x16x32xbf16>
    %1 = vector.shape_cast %0 : vector<1x1x16x32xbf16> to vector<16x32xbf16>
    %c0_3 = arith.constant 0 : index
    %c0_4 = arith.constant 0 : index
    %c0_5 = arith.constant 0 : index
    %c0_6 = arith.constant 0 : index
    %2 = vector.load %arg4[%c0_3, %c0_4, %c0_5, %c0_6] : memref<1x1x16x32xbf16, #tpu.memory_space<vmem>>, vector<1x1x16x32xbf16>
    %3 = vector.shape_cast %2 : vector<1x1x16x32xbf16> to vector<16x32xbf16>
    %c0_7 = arith.constant 0 : index
    %c0_8 = arith.constant 0 : index
    %4 = vector.load %arg5[%c0_7, %c0_8] : memref<16x16xbf16, #tpu.memory_space<vmem>>, vector<16x16xbf16>
    %cst = arith.constant dense<0.000000e+00> : vector<16x16xf32>
    %5 = tpu.matmul %3, %1, %cst {dimension_numbers = #tpu.dot_dimension_numbers<[1], [1], [0], [0], [0, 0, 1, 0], [], []>} : vector<16x32xbf16>, vector<16x32xbf16>, vector<16x16xf32> -> vector<16x16xf32>
    %cst_9 = arith.constant 0.000000e+00 : bf16
    %6 = vector.broadcast %cst_9 : bf16 to vector<16x16xbf16>
    %7 = arith.cmpf ogt, %4, %6 : vector<16x16xbf16>
    %cst_10 = arith.constant 0xFF800000 : f32
    %8 = vector.broadcast %cst_10 : f32 to vector<16x16xf32>
    %9 = arith.select %7, %5, %8 : vector<16x16xi1>, vector<16x16xf32>
    %cst_11 = arith.constant dense<0xFF800000> : vector<16xf32>
    %10 = vector.multi_reduction <maximumf>, %9, %cst_11 [0] : vector<16x16xf32> to vector<16xf32>
    %11 = vector.shape_cast %10 : vector<16xf32> to vector<1x16xf32>
    %12 = arith.extf %4 : vector<16x16xbf16> to vector<16x16xf32>
    %13 = arith.mulf %5, %12 : vector<16x16xf32>
    %cst_12 = arith.constant dense<0.000000e+00> : vector<16xf32>
    %14 = vector.multi_reduction <add>, %13, %cst_12 [0] : vector<16x16xf32> to vector<16xf32>
    %15 = vector.shape_cast %14 : vector<16xf32> to vector<1x16xf32>
    %cst_13 = arith.constant 0.0666666701 : f32
    %16 = vector.broadcast %cst_13 : f32 to vector<1x16xf32>
    %17 = arith.mulf %15, %16 : vector<1x16xf32>
    %18 = arith.subf %11, %17 : vector<1x16xf32>
    %c0_14 = arith.constant 0 : index
    %c0_15 = arith.constant 0 : index
    %c0_16 = arith.constant 0 : index
    %c0_17 = arith.constant 0 : index
    %19 = vector.load %arg6[%c0_14, %c0_15, %c0_16, %c0_17] : memref<1x1x1x16xf32, #tpu.memory_space<vmem>>, vector<1x1x1x16xf32>
    %20 = vector.shape_cast %19 : vector<1x1x1x16xf32> to vector<1x16xf32>
    %21 = vector.shape_cast %18 : vector<1x16xf32> to vector<1x1x1x16xf32>
    tpu.vector_store %arg6[%c0_14, %c0_15, %c0_16, %c0_17], %21 {strides = array<i32>} : memref<1x1x1x16xf32, #tpu.memory_space<vmem>>, vector<1x1x1x16xf32>,
    return
  }
  func.func @transform_0(%arg0: i32, %arg1: i32, %arg2: i32) -> (i32, i32, i32, i32) {
    %c0_i32 = arith.constant 0 : i32
    %c0_i32_0 = arith.constant 0 : i32
    return %arg0, %arg1, %arg2, %c0_i32 : i32, i32, i32, i32
  }
  func.func @transform_1(%arg0: i32, %arg1: i32, %arg2: i32) -> (i32, i32, i32, i32) {
    %c0_i32 = arith.constant 0 : i32
    %c0_i32_0 = arith.constant 0 : i32
    %c0_i32_1 = arith.constant 0 : i32
    return %arg0, %arg1, %c0_i32, %c0_i32_0 : i32, i32, i32, i32
  }
  func.func @transform_2(%arg0: i32, %arg1: i32, %arg2: i32) -> (i32, i32) {
    %c0_i32 = arith.constant 0 : i32
    %c0_i32_0 = arith.constant 0 : i32
    return %c0_i32, %arg2 : i32, i32
  }
  func.func @transform_3(%arg0: i32, %arg1: i32, %arg2: i32) -> (i32, i32, i32, i32) {
    %c0_i32 = arith.constant 0 : i32
    %c0_i32_0 = arith.constant 0 : i32
    return %arg0, %arg1, %c0_i32, %arg2 : i32, i32, i32, i32
  }
}

</mosaic_0001>

<llo_original>
// kernel: tpu_custom_call.1
$region0: #{tpu_custom_call.1}
  #allocation0 [shape = 'u32[]', space=smem, size = 0x4, offset = 0x4, fixed_abs, tag = 'smem constant byte address 0x4 - core index']
  #allocation1 [shape = 'u32[72,128]{1,0:T(1,128)}', space=vmem, size = 0x9000, scoped, tag = 'internal scratch']
  %s0 = inlined_call_operand.hbm [shape: bf16[2,2,16,32], index: 0, kind: input, shape index: {}]
  %s1 = inlined_call_operand.hbm [shape: bf16[2,2,16,32], index: 1, kind: input, shape index: {}]
  %s2 = inlined_call_operand.hbm [shape: bf16[16,16], index: 2, kind: input, shape index: {}]
  %s3 = inlined_call_operand.hbm [shape: f32[2,2,1,16], index: 3, kind: output, shape index: {}]
  %s4 = sld [smem:[#allocation0]]
  $region57: #{tpu_custom_call.1} parent=0
    _
  %s6 = ssub.s32 1, %s4
  %s7 = scalar_select 0, %s6, %s4
  $region1: #{tpu_custom_call.1} parent=0
    #allocation2 [shape = 'u8[8192]{0}', space=vmem, size = 0x2000, scoped, tag = 'input window, operand 0']
    #allocation3 [shape = 's32[2]{0}', space=sflag, size = 0x8, scoped, tag = 'scoped memory for tpu_custom_call.1']
    #allocation4 [shape = 's32[2]{0}', space=sflag, size = 0x8, scoped, tag = 'scoped memory for tpu_custom_call.1']
    #allocation5 [shape = 'u8[8192]{0}', space=vmem, size = 0x2000, scoped, tag = 'input window, operand 1']
    #allocation6 [shape = 's32[2]{0}', space=sflag, size = 0x8, scoped, tag = 'scoped memory for tpu_custom_call.1']
    #allocation7 [shape = 'u8[4096]{0}', space=vmem, size = 0x1000, scoped, tag = 'input window, operand 2, single buffered']
    #allocation8 [shape = 'u8[1024]{0}', space=vmem, size = 0x400, scoped, tag = 'output window, operand 0']
    %8 = vsyncpa [#allocation3], 0
    %s9 = scalar_lea.sflag [#allocation3], 1
    %10 = vsyncpa %s9, 0
    %11 = vsyncpa [#allocation6], 0
    %s12 = scalar_lea.sflag [#allocation6], 1
    %13 = vsyncpa %s12, 0
    %14 = vsyncpa [#allocation4], 0
    %s15 = scalar_lea.sflag [#allocation4], 1
    %16 = vsyncpa %s15, 0
    loop: start=0, step=1, limit=6
    $region2: #{tpu_custom_call.1} parent=1 // loop_pre_header
      _
    $region3: #{tpu_custom_call.1} parent=1 // loop_header
      %s18 = sphi 0, %s22
      %p19 = scmp.ge.s32.totalorder %s18, 6
      %s25 = sphi 0, %s44
      %s26 = sphi 0, %s40
      %s27 = sphi 0, %s36
      %s28 = sphi 0, %s25
      %s29 = sphi 0, %s26
      %s30 = sphi 0, %s27
      %s31 = sphi 0, %s28
      %s32 = sphi 0, %s29
      %s33 = sphi 0, %s30
      %s51 = sphi 0, %s53
      %s54 = sphi 0, %s51
      %s55 = sphi 0, %s54
      %s71 = sphi 0, %s55
      %s79 = sphi 0, %s81
      %s82 = sphi 0, %s79
      %s83 = sphi 0, %s82
      %s99 = sphi 0, %s83
      %s105 = sphi 0, %s107
      %s108 = sphi 0, %s105
      %s109 = sphi 0, %s108
      %s125 = sphi 0, %s109
      %s135 = sphi 0, %s137
      %s138 = sphi 0, %s135
      %s139 = sphi 0, %s138
      %s155 = sphi 0, %s139
    $region4: #{tpu_custom_call.1} parent=1 // loop_header_branch
      %21 = sbr.rel (%p19) target = $region8
    $region5: #{tpu_custom_call.1} parent=1 // loop_body
      %s23 = ssub.s32 %s18, 1
      %s24 = ssub.s32 %s18, 2
      %s34 = sadd.s32 1, %s27
      %p35 = scmp.ge.s32.totalorder %s34, 1
      %s36 = scalar_select %p35, 0, %s34
      %s37 = sadd.s32 1, %s26
      %s38 = scalar_select %p35, %s37, %s26
      %p39 = scmp.ge.s32.totalorder %s38, 2
      %s40 = scalar_select %p39, 0, %s38
      %s41 = sadd.s32 1, %s25
      %s42 = scalar_select %p39, %s41, %s25
      %p43 = scmp.ge.s32.totalorder %s42, 2
      %s44 = scalar_select %p43, 0, %s42
      %s45 = ssub.s32 %s25, %s44
      %s46 = ssub.s32 %s26, %s40
      %s47 = sor.u32 %s45, %s46
      %s48 = ssub.s32 %s27, %s36
      %s49 = sor.u32 %s47, %s48
      %p50 = scmp.eq.s32.totalorder %s49, 0
      %s52 = sadd.s32 %s51, 1
      %s53 = scalar_select %p50, %s51, %s52
      %p56 = pneg %p50
      %p57 = scmp.eq.s32.totalorder %s18, 3
      %p58 = por %p56, %p57
      %p59 = scmp.ne.s32.totalorder %s51, %s54
      %p60 = scmp.eq.s32.totalorder %s18, 0
      %p61 = por %p59, %p60
      %p62 = scmp.ne.s32.totalorder %s51, %s54
      %p63 = scmp.eq.s32.totalorder %s23, 3
      %p64 = por %p62, %p63
      %p65 = scmp.ne.s32.totalorder %s54, %s55
      %p66 = scmp.eq.s32.totalorder %s23, 0
      %p67 = por %p65, %p66
      %p68 = scmp.ne.s32.totalorder %s54, %s55
      %p69 = scmp.eq.s32.totalorder %s24, 3
      %p70 = por %p68, %p69
      %p72 = scmp.ne.s32.totalorder %s55, %s71
      %p73 = scmp.eq.s32.totalorder %s24, 0
      %p74 = por %p72, %p73
      %s75 = ssub.s32 %s25, %s44
      %s76 = ssub.s32 %s26, %s40
      %s77 = sor.u32 %s75, %s76
      %p78 = scmp.eq.s32.totalorder %s77, 0
      %s80 = sadd.s32 %s79, 1
      %s81 = scalar_select %p78, %s79, %s80
      %p84 = pneg %p78
      %p85 = scmp.eq.s32.totalorder %s18, 3
      %p86 = por %p84, %p85
      %p87 = scmp.ne.s32.totalorder %s79, %s82
      %p88 = scmp.eq.s32.totalorder %s18, 0
      %p89 = por %p87, %p88
      %p90 = scmp.ne.s32.totalorder %s79, %s82
      %p91 = scmp.eq.s32.totalorder %s23, 3
      %p92 = por %p90, %p91
      %p93 = scmp.ne.s32.totalorder %s82, %s83
      %p94 = scmp.eq.s32.totalorder %s23, 0
      %p95 = por %p93, %p94
      %p96 = scmp.ne.s32.totalorder %s82, %s83
      %p97 = scmp.eq.s32.totalorder %s24, 3
      %p98 = por %p96, %p97
      %p100 = scmp.ne.s32.totalorder %s83, %s99
      %p101 = scmp.eq.s32.totalorder %s24, 0
      %p102 = por %p100, %p101
      %s103 = ssub.s32 %s27, %s36
      %p104 = scmp.eq.s32.totalorder %s103, 0
      %s106 = sadd.s32 %s105, 1
      %s107 = scalar_select %p104, %s105, %s106
      %p110 = pneg %p104
      %p111 = scmp.eq.s32.totalorder %s18, 3
      %p112 = por %p110, %p111
      %p113 = scmp.ne.s32.totalorder %s105, %s108
      %p114 = scmp.eq.s32.totalorder %s18, 0
      %p115 = por %p113, %p114
      %p116 = scmp.ne.s32.totalorder %s105, %s108
      %p117 = scmp.eq.s32.totalorder %s23, 3
      %p118 = por %p116, %p117
      %p119 = scmp.ne.s32.totalorder %s108, %s109
      %p120 = scmp.eq.s32.totalorder %s23, 0
      %p121 = por %p119, %p120
      %p122 = scmp.ne.s32.totalorder %s108, %s109
      %p123 = scmp.eq.s32.totalorder %s24, 3
      %p124 = por %p122, %p123
      %p126 = scmp.ne.s32.totalorder %s109, %s125
      %p127 = scmp.eq.s32.totalorder %s24, 0
      %p128 = por %p126, %p127
      %s129 = ssub.s32 %s25, %s44
      %s130 = ssub.s32 %s26, %s40
      %s131 = sor.u32 %s129, %s130
      %s132 = ssub.s32 %s27, %s36
      %s133 = sor.u32 %s131, %s132
      %p134 = scmp.eq.s32.totalorder %s133, 0
      %s136 = sadd.s32 %s135, 1
      %s137 = scalar_select %p134, %s135, %s136
      %p140 = pneg %p134
      %p141 = scmp.eq.s32.totalorder %s18, 3
      %p142 = por %p140, %p141
      %p143 = scmp.ne.s32.totalorder %s135, %s138
      %p144 = scmp.eq.s32.totalorder %s18, 0
      %p145 = por %p143, %p144
      %p146 = scmp.ne.s32.totalorder %s135, %s138
      %p147 = scmp.eq.s32.totalorder %s23, 3
      %p148 = por %p146, %p147
      %p149 = scmp.ne.s32.totalorder %s138, %s139
      %p150 = scmp.eq.s32.totalorder %s23, 0
      %p151 = por %p149, %p150
      %p152 = scmp.ne.s32.totalorder %s138, %s139
      %p153 = scmp.eq.s32.totalorder %s24, 3
      %p154 = por %p152, %p153
      %p156 = scmp.ne.s32.totalorder %s139, %s155
      %p157 = scmp.eq.s32.totalorder %s24, 0
      %p158 = por %p156, %p157
      %p159 = scmp.le.s32.totalorder 1, %s18
      %p160 = scmp.lt.s32.totalorder %s18, 5
      %p161 = pnand %p159, %p160
      %p162 = pneg %p161
      // Predicated region
      $region9: #{tpu_custom_call.1} parent=5 // pred_check
        _
      $region10: #{tpu_custom_call.1} parent=5 // pred_check_branch
        %164 = sbr.rel (%p161) target = $region12
      $region11: #{tpu_custom_call.1} parent=5 // pred_region
        %s165 = ssub.s32 %s18, 1
        // Predicated region
        $region13: #{tpu_custom_call.1} parent=11 // pred_check
          %p166 = pneg %p121
        $region14: #{tpu_custom_call.1} parent=11 // pred_check_branch
          %168 = sbr.rel (%p166) target = $region16
        $region15: #{tpu_custom_call.1} parent=11 // pred_region
          %170 = vsyncadd [#allocation6], 0
          %s171 = smul.addr %s30, 4
          %s172 = scalar_lea.hbm %s2, %s171
          %s173 = sshll.u32 %s172, 4
          %s174 = int_to_ptr.hbm [resolvable:$true] %s173
          %s175 = sshll.u32 [#allocation7], 4
          %s176 = int_to_ptr.vmem [resolvable:$true] %s175
          %181 = dma.hbm_to_vmem [thread:$0]  %s174, 128, %s176, [#allocation6], 64, 64, 4
        $region16: #{tpu_custom_call.1} parent=11 // pred_fallthru
          _
      $region12: #{tpu_custom_call.1} parent=5 // pred_fallthru
        _
      %p182 = scmp.lt.s32.totalorder %s18, 4
      // Predicated region
      $region17: #{tpu_custom_call.1} parent=5 // pred_check
        %p183 = pneg %p182
      $region18: #{tpu_custom_call.1} parent=5 // pred_check_branch
        %185 = sbr.rel (%p183) target = $region20
      $region19: #{tpu_custom_call.1} parent=5 // pred_region
        // Predicated region
        $region21: #{tpu_custom_call.1} parent=19 // pred_check
          %p186 = pneg %p61
        $region22: #{tpu_custom_call.1} parent=19 // pred_check_branch
          %188 = sbr.rel (%p186) target = $region24
        $region23: #{tpu_custom_call.1} parent=19 // pred_region
          %s189 = sand.u32 %s51, 1
          %s190 = scalar_lea.sflag [#allocation3], %s189
          %s191 = sand.u32 %s51, 1
          %s192 = smul.addr %s191, 8
          %s193 = scalar_lea.vmem [#allocation2], %s192
          %s194 = smul.u32 2, %s27
          %196 = vsyncadd %s190, 0
          %s197 = smul.addr %s26, 2
          %s198 = sadd.s32 %s194, %s197
          %s199 = smul.addr %s25, 4
          %s200 = sadd.s32 %s198, %s199
          %s201 = smul.addr %s200, 4
          %s202 = scalar_lea.hbm %s0, %s201
          %s203 = sshll.u32 %s202, 4
          %s204 = int_to_ptr.hbm [resolvable:$true] %s203
          %s205 = sshll.u32 %s193, 4
          %s206 = int_to_ptr.vmem [resolvable:$true] %s205
          %211 = dma.hbm_to_vmem [thread:$0]  %s204, 128, %s206, %s190, 64, 64, 4
        $region24: #{tpu_custom_call.1} parent=19 // pred_fallthru
          _
        // Predicated region
        $region25: #{tpu_custom_call.1} parent=19 // pred_check
          %p212 = pneg %p89
        $region26: #{tpu_custom_call.1} parent=19 // pred_check_branch
          %214 = sbr.rel (%p212) target = $region28
        $region27: #{tpu_custom_call.1} parent=19 // pred_region
          %s215 = sand.u32 %s18, 1
          %s216 = scalar_lea.sflag [#allocation6], %s215
          %s217 = sand.u32 %s79, 1
          %s218 = smul.addr %s217, 8
          %s219 = scalar_lea.vmem [#allocation5], %s218
          %221 = vsyncadd %s216, 0
          %s222 = smul.addr %s26, 2
          %s223 = smul.addr %s25, 4
          %s224 = sadd.s32 %s222, %s223
          %s225 = smul.addr %s224, 4
          %s226 = scalar_lea.hbm %s1, %s225
          %s227 = sshll.u32 %s226, 4
          %s228 = int_to_ptr.hbm [resolvable:$true] %s227
          %s229 = sshll.u32 %s219, 4
          %s230 = int_to_ptr.vmem [resolvable:$true] %s229
          %235 = dma.hbm_to_vmem [thread:$0]  %s228, 128, %s230, %s216, 64, 64, 4
        $region28: #{tpu_custom_call.1} parent=19 // pred_fallthru
          _
      $region20: #{tpu_custom_call.1} parent=5 // pred_fallthru
        _
      %p236 = scmp.le.s32.totalorder 1, %s18
      %p237 = scmp.lt.s32.totalorder %s18, 5
      %p238 = pnand %p236, %p237
      %p239 = pneg %p238
      // Predicated region
      $region29: #{tpu_custom_call.1} parent=5 // pred_check
        _
      $region30: #{tpu_custom_call.1} parent=5 // pred_check_branch
        %241 = sbr.rel (%p238) target = $region32
      $region31: #{tpu_custom_call.1} parent=5 // pred_region
        %s242 = ssub.s32 %s18, 1
        %s243 = sand.u32 %s54, 1
        %s244 = scalar_lea.sflag [#allocation3], %s243
        %s245 = sand.u32 %s54, 1
        %s246 = smul.addr %s245, 8
        %s247 = scalar_lea.vmem [#allocation2], %s246
        // Predicated region
        $region33: #{tpu_custom_call.1} parent=31 // pred_check
          %p248 = pneg %p67
        $region34: #{tpu_custom_call.1} parent=31 // pred_check_branch
          %250 = sbr.rel (%p248) target = $region36
        $region35: #{tpu_custom_call.1} parent=31 // pred_region
          %252 = dma.done %s244, 128
        $region36: #{tpu_custom_call.1} parent=31 // pred_fallthru
          _
        %s253 = sand.u32 %s23, 1
        %s254 = scalar_lea.sflag [#allocation6], %s253
        %s255 = sand.u32 %s82, 1
        %s256 = smul.addr %s255, 8
        %s257 = scalar_lea.vmem [#allocation5], %s256
        // Predicated region
        $region37: #{tpu_custom_call.1} parent=31 // pred_check
          %p258 = pneg %p95
        $region38: #{tpu_custom_call.1} parent=31 // pred_check_branch
          %260 = sbr.rel (%p258) target = $region40
        $region39: #{tpu_custom_call.1} parent=31 // pred_region
          %262 = dma.done %s254, 128
        $region40: #{tpu_custom_call.1} parent=31 // pred_fallthru
          _
        // Predicated region
        $region41: #{tpu_custom_call.1} parent=31 // pred_check
          %p263 = pneg %p121
        $region42: #{tpu_custom_call.1} parent=31 // pred_check_branch
          %265 = sbr.rel (%p263) target = $region44
        $region43: #{tpu_custom_call.1} parent=31 // pred_region
          %267 = dma.done [#allocation6], 128
        $region44: #{tpu_custom_call.1} parent=31 // pred_fallthru
          _
        %s268 = sand.u32 %s54, 1
        %s269 = scalar_lea.sflag [#allocation3], %s268
        %s270 = sand.u32 %s54, 1
        %s271 = smul.addr %s270, 8
        %s272 = scalar_lea.vmem [#allocation2], %s271
        %p273 = pneg %p67
        %p274 = pneg %p64
        %s275 = sand.u32 %s23, 1
        %s276 = scalar_lea.sflag [#allocation6], %s275
        %s277 = sand.u32 %s82, 1
        %s278 = smul.addr %s277, 8
        %s279 = scalar_lea.vmem [#allocation5], %s278
        %p280 = pneg %p95
        %p281 = pneg %p92
        %p282 = pneg %p121
        %p283 = pneg %p118
        %p284 = pneg %p151
        %p285 = pneg %p148
        %s286 = sand.u32 %s138, 1
        %s287 = scalar_lea.sflag [#allocation4], %s286
        %s288 = sand.u32 %s138, 1
        %s289 = scalar_lea.vmem [#allocation8], %s288
        %s290 = smul.u32 2, %s30
        %v292 = vld [vmem:[%s247] sm:$0xf]
        %v293 = vld [vmem:[%s247 + $0x4] sm:$0xf]
        %v294 = vld [vmem:[%s257] sm:$0xf]
        %v295 = vld [vmem:[%s257 + $0x4] sm:$0xf]
        %v296 = vld [vmem:[#allocation7] sm:$0xf]
        %v297 = vld [vmem:[#allocation7 + $0x4] sm:$0xf]
        %v300 = vunpack.c.l.b16 %v294
        %v301 = vunpack.c.l.b16 %v295
        %v302 = vpack.c.b16 %v301, %v300
        %v305 = vunpack.c.l.b16 %v292
        %v306 = vunpack.c.l.b16 %v293
        %v307 = vpack.c.b16 %v306, %v305
        %vm308 = vcmask 261120
        %v310 = vsel %vm308, %v302, 0
        %v313 = vsel %vm308, %v307, 0
        %315 = vmatpush.bf16.xpose.msra.mxu0 0
        %316 = vmatpush.bf16.xpose.msra.mxu0 0
        %317 = vmatpush.bf16.xpose.msra.mxu0 0
        %318 = vmatpush.bf16.xpose.msra.mxu0 0
        %319 = vmatpush.bf16.xpose.msra.mxu0 0
        %320 = vmatpush.bf16.xpose.msra.mxu0 0
        %321 = vmatpush.bf16.xpose.msra.mxu0 0
        %322 = vmatpush.bf16.xpose.msra.mxu0 %v313
        %323 = vmatmul.bf16.gmra.mxu0 %v310
        %v324 = vpop.f32.mrf.mxu0
        %v325 = vadd.f32 0.0, %v324
        %v326 = vpop.f32.mrf.mxu0
        %v327 = vadd.f32 0.0, %v326
        %328 = vdwg.mxu0
        %v329 = vunpack.c.l.bf16 %v296
        %v330 = vunpack.c.l.bf16 %v297
        %vm331 = vcmp.gt.f32.partialorder %v329, 0.0
        %vm332 = vcmp.gt.f32.partialorder %v330, 0.0
        %v333 = vsel %vm331, %v325, -inf
        %v334 = vsel %vm332, %v327, -inf
        %vm335 = vcmask 130048
        %v336 = vsel %vm335, %v333, -inf
        %v337 = vsel %vm335, %v334, -inf
        %v338 = vmax.f32 %v336, %v337
        %v339 = vrot.slane %v338, 4
        %v340 = vmax.f32 %v338, %v339
        %v341 = vrot.slane %v340, 2
        %v342 = vmax.f32 %v340, %v341
        %v343 = vrot.slane %v342, 1
        %v344 = vmax.f32 %v342, %v343
        %v345 = vmul.f32 %v325, %v329
        %v346 = vmul.f32 %v327, %v330
        %v347 = vsel %vm335, %v345, 0.0
        %v348 = vsel %vm335, %v346, 0.0
        %v349 = vadd.f32 %v347, %v348
        %v350 = vrot.slane %v349, 4
        %v351 = vadd.f32 %v349, %v350
        %v352 = vrot.slane %v351, 2
        %v353 = vadd.f32 %v351, %v352
        %v354 = vrot.slane %v353, 1
        %v355 = vadd.f32 %v353, %v354
        %v356 = vmul.f32 %v355, 0.06666667
        %v357 = vsub.f32 %v344, %v356
        %vm358 = vcmask 122880
        %359 = vst.msk [vmem:[%s289] sm:$0x1] %vm358, %v357
        %s360 = sand.u32 %s138, 1
        %s361 = scalar_lea.sflag [#allocation4], %s360
        %s362 = sand.u32 %s138, 1
        %s363 = scalar_lea.vmem [#allocation8], %s362
        // Predicated region
        $region45: #{tpu_custom_call.1} parent=31 // pred_check
          %p364 = pneg %p148
        $region46: #{tpu_custom_call.1} parent=31 // pred_check_branch
          %366 = sbr.rel (%p364) target = $region48
        $region47: #{tpu_custom_call.1} parent=31 // pred_region
          %368 = vsyncadd %s361, 0
          %s369 = sadd.s32 %s30, %s29
          %s370 = smul.addr %s28, 2
          %s371 = sadd.s32 %s369, %s370
          %s372 = scalar_lea.hbm %s3, %s371
          %s374 = sshll.u32 %s363, 4
          %s375 = int_to_ptr.vmem [resolvable:$true] %s374
          %s376 = sshll.u32 %s372, 4
          %s377 = int_to_ptr.hbm [resolvable:$true] %s376
          %379 = dma.vmem_to_hbm [thread:$0]  %s375, 16, %s377, %s361
        $region48: #{tpu_custom_call.1} parent=31 // pred_fallthru
          _
      $region32: #{tpu_custom_call.1} parent=5 // pred_fallthru
        _
      %p380 = scmp.le.s32.totalorder 2, %s18
      // Predicated region
      $region49: #{tpu_custom_call.1} parent=5 // pred_check
        %p381 = pneg %p380
      $region50: #{tpu_custom_call.1} parent=5 // pred_check_branch
        %383 = sbr.rel (%p381) target = $region52
      $region51: #{tpu_custom_call.1} parent=5 // pred_region
        %s384 = ssub.s32 %s18, 2
        // Predicated region
        $region53: #{tpu_custom_call.1} parent=51 // pred_check
          %p385 = pneg %p154
        $region54: #{tpu_custom_call.1} parent=51 // pred_check_branch
          %387 = sbr.rel (%p385) target = $region56
        $region55: #{tpu_custom_call.1} parent=51 // pred_region
          %s388 = sand.u32 %s139, 1
          %s389 = scalar_lea.sflag [#allocation4], %s388
          %s390 = sand.u32 %s139, 1
          %s391 = scalar_lea.vmem [#allocation8], %s390
          %393 = dma.done %s389, 16
        $region56: #{tpu_custom_call.1} parent=51 // pred_fallthru
          _
      $region52: #{tpu_custom_call.1} parent=5 // pred_fallthru
        _
    $region6: #{tpu_custom_call.1} parent=1 // loop_footer
      %s22 = sadd.s32 1, %s18
    $region7: #{tpu_custom_call.1} parent=1 // loop_footer_branch
      %17 = sbr.rel target = $region3
    $region8: #{tpu_custom_call.1} parent=1 // loop_exit
      _
    %394 = vsyncpa [#allocation3], 1
    %s395 = scalar_lea.sflag [#allocation3], 1
    %396 = vsyncpa %s395, 1
    %397 = vsyncpa [#allocation6], 1
    %s398 = scalar_lea.sflag [#allocation6], 1
    %399 = vsyncpa %s398, 1
    %400 = vsyncpa [#allocation4], 1
    %s401 = scalar_lea.sflag [#allocation4], 1
    %402 = vsyncpa %s401, 1

</llo_original>
